<compile_context>
chip_gen: v7x
topology: tpu7x:2x2x1
jax: 0.10.0
libtpu: 0.0.40
codegen_flags: <defaults>
</compile_context>

<pallas_src>
import numpy as np
import jax
import jax.numpy as jnp
from jax.experimental import pallas as pl
from jax.experimental.pallas import tpu as pltpu

# ---- small synthetic sizes (powers of two so %T / %V become bit-masks) ---------
B = 8      # number of (cxt, hyp) pairs
T = 16     # padded sequence length (max_l_cxt + max_l_rsp analogue)
V = 32     # synthetic embedding vocab (real GPT-2 ids are mapped mod V)
H = 32     # synthetic hidden size
NT = 2 * B * T   # total token rows (pos + neg batched together)

IX_EOS = 50256   # kept for id construction parity with the PyTorch module

# Constant per-example selector (example r owns token rows [r*T, (r+1)*T)).
# Hoisted to a host-side constant so the kernel never rebuilds it (saves VALU).
_SEL = np.kron(np.eye(2 * B, dtype=np.float32), np.ones((1, T), dtype=np.float32))


# ---- single fused Pallas kernel -------------------------------------------------

def fused_scorer_kernel(ids_ref, lens_rep_ref, lens_ref, sel_ref, emb_ref, w_ref,
                        out_ref):
    """ids:      (2B*T, 1) int32  flattened pos+neg token ids
       lens_rep: (2B*T, 1) int32  per-token sequence length (len of owning example)
       lens:     (2B, 1)   f32    per-example lengths
       sel:      (2B, 2B*T) f32   constant example-ownership selector
       emb:      (V, H)    f32    embedding table
       w:        (H, 1)    f32    projection to a scalar score
       out:      (8, 128)  f32    lane-dense slab: [:,0]=probs, [0,1]=loss
    """
    # token-validity mask built in VMEM: (position within sequence) < length
    pos = jax.lax.broadcasted_iota(jnp.int32, (NT, 1), 0) & (T - 1)   # r % T (T pow2)
    mask = (pos < lens_rep_ref[...]).astype(jnp.float32)              # (NT, 1)

    # masked one-hot token features built in VMEM (never round-trips HBM)
    ids_mod = ids_ref[...] & (V - 1)                                  # ids % V (V pow2)
    lane_v = jax.lax.broadcasted_iota(jnp.int32, (NT, V), 1)
    onehot = jnp.where(lane_v == ids_mod, mask, 0.0)                  # (NT, V) f32

    # one batched MXU matmul for pos+neg; bf16 inputs (exact 0/1), f32 accumulation
    tok_emb = jnp.dot(onehot.astype(jnp.bfloat16),
                      emb_ref[...].astype(jnp.bfloat16),
                      preferred_element_type=jnp.float32)             # (NT, H)

    # per-example sum over the sequence via the constant selector matmul
    emb_sum = jnp.dot(sel_ref[...], tok_emb,
                      preferred_element_type=jnp.float32)             # (2B, H)

    # masked mean: EUP reciprocal of the (clamped) token count, no denom matmul
    inv_len = pl.reciprocal(jnp.maximum(lens_ref[...], 1.0), approx=True)  # (2B, 1)
    emb_mean = emb_sum * inv_len

    logits = jnp.dot(emb_mean, w_ref[...],
                     preferred_element_type=jnp.float32)              # (2B, 1)

    lp = logits[0:B, :]
    ln = logits[B:2 * B, :]
    diff = lp - ln                                                    # (B, 1)

    # probs = exp(lp)/(exp(lp)+exp(ln)) == sigmoid(lp-ln), overflow-safe
    probs = pl.reciprocal(1.0 + jnp.exp(-diff), approx=True)          # (B, 1)
    # -log(probs) == softplus(-(lp-ln)); stable form avoids exp overflow
    nll = jnp.maximum(-diff, 0.0) + jnp.log(1.0 + jnp.exp(-jnp.abs(diff)))
    loss11 = jnp.sum(nll, axis=0, keepdims=True) * (1.0 / B)          # (1, 1)

    # single unmasked full-tile store (lane-dense (8,128) slab)
    lane = jax.lax.broadcasted_iota(jnp.int32, (B, 128), 1)
    out_ref[...] = jnp.where(lane == 0, probs,
                             jnp.where(lane == 1, loss11, 0.0)).astype(jnp.float32)


# ---- wrapper --------------------------------------------------------------------

_vmem = pl.BlockSpec(memory_space=pltpu.MemorySpace.VMEM)


def scorer_forward(ids_pos, lens_pos, ids_neg, lens_neg, emb, w):
    # TODO(synk): ScorerBase.core is abstract (defined in subclasses); a synthetic
    #             embedding-pool-project core stands in for it here.
    ids_all = jnp.concatenate([ids_pos, ids_neg], axis=0)             # (2B, T)
    lens_all = jnp.concatenate([lens_pos, lens_neg], axis=0)          # (2B,)

    ids_flat = ids_all.reshape(NT, 1).astype(jnp.int32)               # free reshape
    lens_rep = jnp.repeat(lens_all, T).reshape(NT, 1).astype(jnp.int32)
    lens_col = lens_all.reshape(2 * B, 1).astype(jnp.float32)
    sel = jnp.asarray(_SEL)                                           # compile-time const

    # TODO(synk): if B is ever scaled up, add a grid over examples with
    #             dimension_semantics=("parallel",) so v7x's 2 TensorCores share it.
    out = pl.pallas_call(
        fused_scorer_kernel,
        out_shape=jax.ShapeDtypeStruct((B, 128), jnp.float32),
        in_specs=[_vmem, _vmem, _vmem, _vmem, _vmem, _vmem],
        out_specs=_vmem,
    )(ids_flat, lens_rep, lens_col, sel, emb, w)

    loss = out[0, 1]
    probs = out[:, 0]
    return loss, probs


# ---- main -----------------------------------------------------------------------

if __name__ == "__main__":
    key = jax.random.PRNGKey(0)
    k_ids_p, k_ids_n, k_len_p, k_len_n, k_emb, k_w = jax.random.split(key, 6)

    # TODO(synk): GPT2Tokenizer string tokenization / list-padding (tokenize, cat_ids)
    #             has no tensor equivalent; deterministic random token ids are used.
    ids_pos = jax.random.randint(k_ids_p, (B, T), 0, IX_EOS + 1, dtype=jnp.int32)
    ids_neg = jax.random.randint(k_ids_n, (B, T), 0, IX_EOS + 1, dtype=jnp.int32)
    lens_pos = jax.random.randint(k_len_p, (B,), 4, T + 1, dtype=jnp.int32)
    lens_neg = jax.random.randint(k_len_n, (B,), 4, T + 1, dtype=jnp.int32)

    # deterministic synthetic parameters for the stand-in core
    emb = jax.random.normal(k_emb, (V, H), dtype=jnp.float32) * 0.1
    w = jax.random.normal(k_w, (H, 1), dtype=jnp.float32) * 0.1

    loss, probs = jax.jit(scorer_forward)(ids_pos, lens_pos, ids_neg, lens_neg, emb, w)
    jax.block_until_ready((loss, probs))

    # sanity: probs in (0,1), loss finite
    assert probs.shape == (B,)
    assert bool(jnp.all((probs > 0.0) & (probs < 1.0)))
    assert bool(jnp.isfinite(loss))

    print("KERNEL_OK")
</pallas_src>

<mosaic_0001>
module attributes {stable_mosaic.version = 11 : i64} {
  func.func @fused_scorer_kernel(%arg0: memref<256x1xi32, #tpu.memory_space<vmem>>, %arg1: memref<256x1xi32, #tpu.memory_space<vmem>>, %arg2: memref<16x1xf32, #tpu.memory_space<vmem>>, %arg3: memref<16x256xf32, #tpu.memory_space<vmem>>, %arg4: memref<32x32xf32, #tpu.memory_space<vmem>>, %arg5: memref<32x1xf32, #tpu.memory_space<vmem>>, %arg6: memref<8x128xf32, #tpu.memory_space<vmem>>) attributes {dimension_semantics = [], scalar_prefetch = 0 : i64, scratch_operands = 0 : i64, tpu.core_type = #tpu.core_type<tc>} {
    %0 = tpu.iota {dimensions = array<i32: 0>} : vector<256x1xi32>
    %c15_i32 = arith.constant 15 : i32
    %1 = vector.broadcast %c15_i32 : i32 to vector<256x1xi32>
    %2 = arith.andi %0, %1 : vector<256x1xi32>
    %c0 = arith.constant 0 : index
    %c0_0 = arith.constant 0 : index
    %3 = vector.load %arg1[%c0, %c0_0] : memref<256x1xi32, #tpu.memory_space<vmem>>, vector<256x1xi32>
    %4 = arith.cmpi slt, %2, %3 : vector<256x1xi32>
    %5 = arith.extui %4 : vector<256x1xi1> to vector<256x1xi32>
    %6 = arith.sitofp %5 : vector<256x1xi32> to vector<256x1xf32>
    %c0_1 = arith.constant 0 : index
    %c0_2 = arith.constant 0 : index
    %7 = vector.load %arg0[%c0_1, %c0_2] : memref<256x1xi32, #tpu.memory_space<vmem>>, vector<256x1xi32>
    %c31_i32 = arith.constant 31 : i32
    %8 = vector.broadcast %c31_i32 : i32 to vector<256x1xi32>
    %9 = arith.andi %7, %8 : vector<256x1xi32>
    %10 = tpu.iota {dimensions = array<i32: 1>} : vector<256x32xi32>
    %11 = vector.broadcast %9 : vector<256x1xi32> to vector<256x32xi32>
    %12 = arith.cmpi eq, %10, %11 : vector<256x32xi32>
    %cst = arith.constant 0.000000e+00 : f32
    %13 = vector.shape_cast %6 : vector<256x1xf32> to vector<256x1xf32>
    %14 = vector.broadcast %13 : vector<256x1xf32> to vector<256x32xf32>
    %15 = vector.broadcast %cst : f32 to vector<256x32xf32>
    %16 = arith.select %12, %14, %15 : vector<256x32xi1>, vector<256x32xf32>
    %17 = arith.truncf %16 : vector<256x32xf32> to vector<256x32xbf16>
    %c0_3 = arith.constant 0 : index
    %c0_4 = arith.constant 0 : index
    %18 = vector.load %arg4[%c0_3, %c0_4] : memref<32x32xf32, #tpu.memory_space<vmem>>, vector<32x32xf32>
    %19 = arith.truncf %18 : vector<32x32xf32> to vector<32x32xbf16>
    %cst_5 = arith.constant dense<0.000000e+00> : vector<256x32xf32>
    %20 = tpu.matmul %17, %19, %cst_5 {dimension_numbers = #tpu.dot_dimension_numbers<[1], [0], [0], [1], [0, 0, 1, 1], [], []>} : vector<256x32xbf16>, vector<32x32xbf16>, vector<256x32xf32> -> vector<256x32xf32>
    %c0_6 = arith.constant 0 : index
    %c0_7 = arith.constant 0 : index
    %21 = vector.load %arg3[%c0_6, %c0_7] : memref<16x256xf32, #tpu.memory_space<vmem>>, vector<16x256xf32>
    %cst_8 = arith.constant dense<0.000000e+00> : vector<16x32xf32>
    %22 = tpu.matmul %21, %20, %cst_8 {dimension_numbers = #tpu.dot_dimension_numbers<[1], [0], [0], [1], [0, 0, 1, 1], [], []>} : vector<16x256xf32>, vector<256x32xf32>, vector<16x32xf32> -> vector<16x32xf32>
    %c0_9 = arith.constant 0 : index
    %c0_10 = arith.constant 0 : index
    %23 = vector.load %arg2[%c0_9, %c0_10] : memref<16x1xf32, #tpu.memory_space<vmem>>, vector<16x1xf32>
    %cst_11 = arith.constant 1.000000e+00 : f32
    %24 = vector.broadcast %cst_11 : f32 to vector<16x1xf32>
    %25 = arith.maximumf %23, %24 : vector<16x1xf32>
    %26 = tpu.reciprocal %25 {approx = true} : vector<16x1xf32> -> vector<16x1xf32>
    %27 = vector.broadcast %26 : vector<16x1xf32> to vector<16x32xf32>
    %28 = arith.mulf %22, %27 : vector<16x32xf32>
    %c0_12 = arith.constant 0 : index
    %c0_13 = arith.constant 0 : index
    %29 = vector.load %arg5[%c0_12, %c0_13] : memref<32x1xf32, #tpu.memory_space<vmem>>, vector<32x1xf32>
    %cst_14 = arith.constant dense<0.000000e+00> : vector<16x1xf32>
    %30 = tpu.matmul %28, %29, %cst_14 {dimension_numbers = #tpu.dot_dimension_numbers<[1], [0], [0], [1], [0, 0, 1, 1], [], []>} : vector<16x32xf32>, vector<32x1xf32>, vector<16x1xf32> -> vector<16x1xf32>
    %31 = vector.extract_strided_slice %30 {offsets = [0, 0], sizes = [8, 1], strides = [1, 1]} : vector<16x1xf32> to vector<8x1xf32>
    %32 = vector.extract_strided_slice %30 {offsets = [8, 0], sizes = [8, 1], strides = [1, 1]} : vector<16x1xf32> to vector<8x1xf32>
    %33 = arith.subf %31, %32 : vector<8x1xf32>
    %cst_15 = arith.constant 0.000000e+00 : f32
    %34 = vector.broadcast %cst_15 : f32 to vector<8x1xf32>
    %35 = arith.subf %34, %33 : vector<8x1xf32>
    %36 = math.exp %35 : vector<8x1xf32>
    %cst_16 = arith.constant 1.000000e+00 : f32
    %37 = vector.broadcast %cst_16 : f32 to vector<8x1xf32>
    %38 = arith.addf %37, %36 : vector<8x1xf32>
    %39 = tpu.reciprocal %38 {approx = true} : vector<8x1xf32> -> vector<8x1xf32>
    %cst_17 = arith.constant 0.000000e+00 : f32
    %40 = vector.broadcast %cst_17 : f32 to vector<8x1xf32>
    %41 = arith.subf %40, %33 : vector<8x1xf32>
    %cst_18 = arith.constant 0.000000e+00 : f32
    %42 = vector.broadcast %cst_18 : f32 to vector<8x1xf32>
    %43 = arith.maximumf %41, %42 : vector<8x1xf32>
    %44 = math.absf %33 : vector<8x1xf32>
    %cst_19 = arith.constant 0.000000e+00 : f32
    %45 = vector.broadcast %cst_19 : f32 to vector<8x1xf32>
    %46 = arith.subf %45, %44 : vector<8x1xf32>
    %47 = math.exp %46 : vector<8x1xf32>
    %cst_20 = arith.constant 1.000000e+00 : f32
    %48 = vector.broadcast %cst_20 : f32 to vector<8x1xf32>
    %49 = arith.addf %48, %47 : vector<8x1xf32>
    %50 = math.log %49 : vector<8x1xf32>
    %51 = arith.addf %43, %50 : vector<8x1xf32>
    %cst_21 = arith.constant dense<0.000000e+00> : vector<1xf32>
    %52 = vector.multi_reduction <add>, %51, %cst_21 [0] : vector<8x1xf32> to vector<1xf32>
    %53 = vector.shape_cast %52 : vector<1xf32> to vector<1x1xf32>
    %cst_22 = arith.constant 1.250000e-01 : f32
    %54 = vector.broadcast %cst_22 : f32 to vector<1x1xf32>
    %55 = arith.mulf %53, %54 : vector<1x1xf32>
    %56 = tpu.iota {dimensions = array<i32: 1>} : vector<8x128xi32>
    %c0_i32 = arith.constant 0 : i32
    %57 = vector.broadcast %c0_i32 : i32 to vector<8x128xi32>
    %58 = arith.cmpi eq, %56, %57 : vector<8x128xi32>
    %c1_i32 = arith.constant 1 : i32
    %59 = vector.broadcast %c1_i32 : i32 to vector<8x128xi32>
    %60 = arith.cmpi eq, %56, %59 : vector<8x128xi32>
    %cst_23 = arith.constant 0.000000e+00 : f32
    %61 = vector.shape_cast %55 : vector<1x1xf32> to vector<1x1xf32>
    %62 = vector.broadcast %61 : vector<1x1xf32> to vector<8x128xf32>
    %63 = vector.broadcast %cst_23 : f32 to vector<8x128xf32>
    %64 = arith.select %60, %62, %63 : vector<8x128xi1>, vector<8x128xf32>
    %65 = vector.shape_cast %39 : vector<8x1xf32> to vector<8x1xf32>
    %66 = vector.broadcast %65 : vector<8x1xf32> to vector<8x128xf32>
    %67 = arith.select %58, %66, %64 : vector<8x128xi1>, vector<8x128xf32>
    %c0_24 = arith.constant 0 : index
    %c0_25 = arith.constant 0 : index
    %68 = vector.load %arg6[%c0_24, %c0_25] : memref<8x128xf32, #tpu.memory_space<vmem>>, vector<8x128xf32>
    tpu.vector_store %arg6[%c0_24, %c0_25], %67 {strides = array<i32>} : memref<8x128xf32, #tpu.memory_space<vmem>>, vector<8x128xf32>,
    return
  }
}

</mosaic_0001>

<llo_original>
// kernel: scorer_forward.1
$region0: #{scorer_forward.1}
  #allocation0 [shape = 'u32[]', space=smem, size = 0x4, offset = 0x4, fixed_abs, tag = 'smem constant byte address 0x4 - core index']
  #allocation1 [shape = 'u32[144,128]{1,0:T(1,128)}', space=vmem, size = 0x12000, scoped, tag = 'internal scratch']
  %s0 = inlined_call_operand.vmem [shape: s32[256,1], index: 0, kind: input, shape index: {}]
  %s1 = inlined_call_operand.vmem [shape: s32[256,1], index: 1, kind: input, shape index: {}]
  %s2 = inlined_call_operand.vmem [shape: f32[16,1], index: 2, kind: input, shape index: {}]
  %s3 = inlined_call_operand.vmem [shape: f32[16,256], index: 3, kind: input, shape index: {}]
  %s4 = inlined_call_operand.vmem [shape: f32[32,32], index: 4, kind: input, shape index: {}]
  %s5 = inlined_call_operand.vmem [shape: f32[32,1], index: 5, kind: input, shape index: {}]
  %s6 = inlined_call_operand.vmem [shape: f32[8,128], index: 6, kind: output, shape index: {}]
  %s7 = sld [smem:[#allocation0]]
  $region34: #{scorer_forward.1} parent=0
    _
  %s9 = ssub.s32 1, %s7
  %s10 = scalar_select 0, %s9, %s7
  // Predicated region
  $region2: #{scorer_forward.1} parent=0 // pred_check
    _
  $region3: #{scorer_forward.1} parent=0 // pred_check_branch
    %12 = sbr.rel (0) target = $region5
  $region4: #{scorer_forward.1} parent=0 // pred_region
    _
  $region5: #{scorer_forward.1} parent=0 // pred_fallthru
    _
  // Predicated region
  $region6: #{scorer_forward.1} parent=0 // pred_check
    _
  $region7: #{scorer_forward.1} parent=0 // pred_check_branch
    %14 = sbr.rel (0) target = $region9
  $region8: #{scorer_forward.1} parent=0 // pred_region
    _
  $region9: #{scorer_forward.1} parent=0 // pred_fallthru
    _
  // Predicated region
  $region10: #{scorer_forward.1} parent=0 // pred_check
    _
  $region11: #{scorer_forward.1} parent=0 // pred_check_branch
    %16 = sbr.rel (0) target = $region13
  $region12: #{scorer_forward.1} parent=0 // pred_region
    _
  $region13: #{scorer_forward.1} parent=0 // pred_fallthru
    _
  // Predicated region
  $region14: #{scorer_forward.1} parent=0 // pred_check
    _
  $region15: #{scorer_forward.1} parent=0 // pred_check_branch
    %18 = sbr.rel (0) target = $region17
  $region16: #{scorer_forward.1} parent=0 // pred_region
    _
  $region17: #{scorer_forward.1} parent=0 // pred_fallthru
    _
  // Predicated region
  $region18: #{scorer_forward.1} parent=0 // pred_check
    _
  $region19: #{scorer_forward.1} parent=0 // pred_check_branch
    %20 = sbr.rel (0) target = $region21
  $region20: #{scorer_forward.1} parent=0 // pred_region
    _
  $region21: #{scorer_forward.1} parent=0 // pred_fallthru
    _
  // Predicated region
  $region22: #{scorer_forward.1} parent=0 // pred_check
    _
  $region23: #{scorer_forward.1} parent=0 // pred_check_branch
    %22 = sbr.rel (0) target = $region25
  $region24: #{scorer_forward.1} parent=0 // pred_region
    _
  $region25: #{scorer_forward.1} parent=0 // pred_fallthru
    _
  %v24 = vlaneseq
  %v25 = vshrl.u32 %v24, 7
  %v26 = vadd.s32 %v25, 8
  %v27 = vadd.s32 %v25, 16
  %v28 = vadd.s32 %v25, 24
  %v29 = vadd.s32 %v25, 32
  %v30 = vadd.s32 %v25, 40
  %v31 = vadd.s32 %v25, 48
  %v32 = vadd.s32 %v25, 56
  %v33 = vadd.s32 %v25, 64
  %v34 = vadd.s32 %v25, 72
  %v35 = vadd.s32 %v25, 80
  %v36 = vadd.s32 %v25, 88
  %v37 = vadd.s32 %v25, 96
  %v38 = vadd.s32 %v25, 104
  %v39 = vadd.s32 %v25, 112
  %v40 = vadd.s32 %v25, 120
  %v41 = vadd.s32 %v25, 128
  %v42 = vadd.s32 %v25, 136
  %v43 = vadd.s32 %v25, 144
  %v44 = vadd.s32 %v25, 152
  %v45 = vadd.s32 %v25, 160
  %v46 = vadd.s32 %v25, 168
  %v47 = vadd.s32 %v25, 176
  %v48 = vadd.s32 %v25, 184
  %v49 = vadd.s32 %v25, 192
  %v50 = vadd.s32 %v25, 200
  %v51 = vadd.s32 %v25, 208
  %v52 = vadd.s32 %v25, 216
  %v53 = vadd.s32 %v25, 224
  %v54 = vadd.s32 %v25, 232
  %v55 = vadd.s32 %v25, 240
  %v56 = vadd.s32 %v25, 248
  %v57 = vand.u32 %v25, 15
  %v58 = vand.u32 %v26, 15
  %v59 = vand.u32 %v27, 15
  %v60 = vand.u32 %v28, 15
  %v61 = vand.u32 %v29, 15
  %v62 = vand.u32 %v30, 15
  %v63 = vand.u32 %v31, 15
  %v64 = vand.u32 %v32, 15
  %v65 = vand.u32 %v33, 15
  %v66 = vand.u32 %v34, 15
  %v67 = vand.u32 %v35, 15
  %v68 = vand.u32 %v36, 15
  %v69 = vand.u32 %v37, 15
  %v70 = vand.u32 %v38, 15
  %v71 = vand.u32 %v39, 15
  %v72 = vand.u32 %v40, 15
  %v73 = vand.u32 %v41, 15
  %v74 = vand.u32 %v42, 15
  %v75 = vand.u32 %v43, 15
  %v76 = vand.u32 %v44, 15
  %v77 = vand.u32 %v45, 15
  %v78 = vand.u32 %v46, 15
  %v79 = vand.u32 %v47, 15
  %v80 = vand.u32 %v48, 15
  %v81 = vand.u32 %v49, 15
  %v82 = vand.u32 %v50, 15
  %v83 = vand.u32 %v51, 15
  %v84 = vand.u32 %v52, 15
  %v85 = vand.u32 %v53, 15
  %v86 = vand.u32 %v54, 15
  %v87 = vand.u32 %v55, 15
  %v88 = vand.u32 %v56, 15
  %v89 = vld [vmem:[%s1] sm:$0xff]
  %v90 = vld [vmem:[%s1 + $0x8] sm:$0xff]
  %v91 = vld [vmem:[%s1 + $0x10] sm:$0xff]
  %v92 = vld [vmem:[%s1 + $0x18] sm:$0xff]
  %v93 = vld [vmem:[%s1 + $0x20] sm:$0xff]
  %v94 = vld [vmem:[%s1 + $0x28] sm:$0xff]
  %v95 = vld [vmem:[%s1 + $0x30] sm:$0xff]
  %v96 = vld [vmem:[%s1 + $0x38] sm:$0xff]
  %v97 = vld [vmem:[%s1 + $0x40] sm:$0xff]
  %v98 = vld [vmem:[%s1 + $0x48] sm:$0xff]
  %v99 = vld [vmem:[%s1 + $0x50] sm:$0xff]
  %v100 = vld [vmem:[%s1 + $0x58] sm:$0xff]
  %v101 = vld [vmem:[%s1 + $0x60] sm:$0xff]
  %v102 = vld [vmem:[%s1 + $0x68] sm:$0xff]
  %v103 = vld [vmem:[%s1 + $0x70] sm:$0xff]
  %v104 = vld [vmem:[%s1 + $0x78] sm:$0xff]
  %v105 = vld [vmem:[%s1 + $0x80] sm:$0xff]
  %v106 = vld [vmem:[%s1 + $0x88] sm:$0xff]
  %v107 = vld [vmem:[%s1 + $0x90] sm:$0xff]
  %v108 = vld [vmem:[%s1 + $0x98] sm:$0xff]
  %v109 = vld [vmem:[%s1 + $0xa0] sm:$0xff]
  %v110 = vld [vmem:[%s1 + $0xa8] sm:$0xff]
  %v111 = vld [vmem:[%s1 + $0xb0] sm:$0xff]
  %v112 = vld [vmem:[%s1 + $0xb8] sm:$0xff]
  %v113 = vld [vmem:[%s1 + $0xc0] sm:$0xff]
  %v114 = vld [vmem:[%s1 + $0xc8] sm:$0xff]
  %v115 = vld [vmem:[%s1 + $0xd0] sm:$0xff]
  %v116 = vld [vmem:[%s1 + $0xd8] sm:$0xff]
  %v117 = vld [vmem:[%s1 + $0xe0] sm:$0xff]
  %v118 = vld [vmem:[%s1 + $0xe8] sm:$0xff]
  %v119 = vld [vmem:[%s1 + $0xf0] sm:$0xff]
  %v120 = vld [vmem:[%s1 + $0xf8] sm:$0xff]
  %vm121 = vcmp.lt.s32.totalorder %v57, %v89
  %vm122 = vcmp.lt.s32.totalorder %v58, %v90
  %vm123 = vcmp.lt.s32.totalorder %v59, %v91
  %vm124 = vcmp.lt.s32.totalorder %v60, %v92
  %vm125 = vcmp.lt.s32.totalorder %v61, %v93
  %vm126 = vcmp.lt.s32.totalorder %v62, %v94
  %vm127 = vcmp.lt.s32.totalorder %v63, %v95
  %vm128 = vcmp.lt.s32.totalorder %v64, %v96
  %vm129 = vcmp.lt.s32.totalorder %v65, %v97
  %vm130 = vcmp.lt.s32.totalorder %v66, %v98
  %vm131 = vcmp.lt.s32.totalorder %v67, %v99
  %vm132 = vcmp.lt.s32.totalorder %v68, %v100
  %vm133 = vcmp.lt.s32.totalorder %v69, %v101
  %vm134 = vcmp.lt.s32.totalorder %v70, %v102
  %vm135 = vcmp.lt.s32.totalorder %v71, %v103
  %vm136 = vcmp.lt.s32.totalorder %v72, %v104
  %vm137 = vcmp.lt.s32.totalorder %v73, %v105
  %vm138 = vcmp.lt.s32.totalorder %v74, %v106
  %vm139 = vcmp.lt.s32.totalorder %v75, %v107
  %vm140 = vcmp.lt.s32.totalorder %v76, %v108
  %vm141 = vcmp.lt.s32.totalorder %v77, %v109
  %vm142 = vcmp.lt.s32.totalorder %v78, %v110
  %vm143 = vcmp.lt.s32.totalorder %v79, %v111
  %vm144 = vcmp.lt.s32.totalorder %v80, %v112
  %vm145 = vcmp.lt.s32.totalorder %v81, %v113
  %vm146 = vcmp.lt.s32.totalorder %v82, %v114
  %vm147 = vcmp.lt.s32.totalorder %v83, %v115
  %vm148 = vcmp.lt.s32.totalorder %v84, %v116
  %vm149 = vcmp.lt.s32.totalorder %v85, %v117
  %vm150 = vcmp.lt.s32.totalorder %v86, %v118
  %vm151 = vcmp.lt.s32.totalorder %v87, %v119
  %vm152 = vcmp.lt.s32.totalorder %v88, %v120
  %v153 = vsel %vm121, 1, 0
  %v154 = vsel %vm122, 1, 0
  %v155 = vsel %vm123, 1, 0
  %v156 = vsel %vm124, 1, 0
  %v157 = vsel %vm125, 1, 0
  %v158 = vsel %vm126, 1, 0
  %v159 = vsel %vm127, 1, 0
  %v160 = vsel %vm128, 1, 0
  %v161 = vsel %vm129, 1, 0
  %v162 = vsel %vm130, 1, 0
  %v163 = vsel %vm131, 1, 0
  %v164 = vsel %vm132, 1, 0
  %v165 = vsel %vm133, 1, 0
  %v166 = vsel %vm134, 1, 0
  %v167 = vsel %vm135, 1, 0
  %v168 = vsel %vm136, 1, 0
  %v169 = vsel %vm137, 1, 0
  %v170 = vsel %vm138, 1, 0
  %v171 = vsel %vm139, 1, 0
  %v172 = vsel %vm140, 1, 0
  %v173 = vsel %vm141, 1, 0
  %v174 = vsel %vm142, 1, 0
  %v175 = vsel %vm143, 1, 0
  %v176 = vsel %vm144, 1, 0
  %v177 = vsel %vm145, 1, 0
  %v178 = vsel %vm146, 1, 0
  %v179 = vsel %vm147, 1, 0
  %v180 = vsel %vm148, 1, 0
  %v181 = vsel %vm149, 1, 0
  %v182 = vsel %vm150, 1, 0
  %v183 = vsel %vm151, 1, 0
  %v184 = vsel %vm152, 1, 0
  %v185 = vcvt.s32.f32 %v153
  %v186 = vcvt.s32.f32 %v154
  %v187 = vcvt.s32.f32 %v155
  %v188 = vcvt.s32.f32 %v156
  %v189 = vcvt.s32.f32 %v157
  %v190 = vcvt.s32.f32 %v158
  %v191 = vcvt.s32.f32 %v159
  %v192 = vcvt.s32.f32 %v160
  %v193 = vcvt.s32.f32 %v161
  %v194 = vcvt.s32.f32 %v162
  %v195 = vcvt.s32.f32 %v163
  %v196 = vcvt.s32.f32 %v164
  %v197 = vcvt.s32.f32 %v165
  %v198 = vcvt.s32.f32 %v166
  %v199 = vcvt.s32.f32 %v167
  %v200 = vcvt.s32.f32 %v168
  %v201 = vcvt.s32.f32 %v169
  %v202 = vcvt.s32.f32 %v170
  %v203 = vcvt.s32.f32 %v171
  %v204 = vcvt.s32.f32 %v172
  %v205 = vcvt.s32.f32 %v173
  %v206 = vcvt.s32.f32 %v174
  %v207 = vcvt.s32.f32 %v175
  %v208 = vcvt.s32.f32 %v176
  %v209 = vcvt.s32.f32 %v177
  %v210 = vcvt.s32.f32 %v178
  %v211 = vcvt.s32.f32 %v179
  %v212 = vcvt.s32.f32 %v180
  %v213 = vcvt.s32.f32 %v181
  %v214 = vcvt.s32.f32 %v182
  %v215 = vcvt.s32.f32 %v183
  %v216 = vcvt.s32.f32 %v184
  %v217 = vld [vmem:[%s0] sm:$0xff]
  %v218 = vld [vmem:[%s0 + $0x8] sm:$0xff]
  %v219 = vld [vmem:[%s0 + $0x10] sm:$0xff]
  %v220 = vld [vmem:[%s0 + $0x18] sm:$0xff]
  %v221 = vld [vmem:[%s0 + $0x20] sm:$0xff]
  %v222 = vld [vmem:[%s0 + $0x28] sm:$0xff]
  %v223 = vld [vmem:[%s0 + $0x30] sm:$0xff]
  %v224 = vld [vmem:[%s0 + $0x38] sm:$0xff]
  %v225 = vld [vmem:[%s0 + $0x40] sm:$0xff]
  %v226 = vld [vmem:[%s0 + $0x48] sm:$0xff]
  %v227 = vld [vmem:[%s0 + $0x50] sm:$0xff]
  %v228 = vld [vmem:[%s0 + $0x58] sm:$0xff]
  %v229 = vld [vmem:[%s0 + $0x60] sm:$0xff]
  %v230 = vld [vmem:[%s0 + $0x68] sm:$0xff]
  %v231 = vld [vmem:[%s0 + $0x70] sm:$0xff]
  %v232 = vld [vmem:[%s0 + $0x78] sm:$0xff]
  %v233 = vld [vmem:[%s0 + $0x80] sm:$0xff]
  %v234 = vld [vmem:[%s0 + $0x88] sm:$0xff]
  %v235 = vld [vmem:[%s0 + $0x90] sm:$0xff]
  %v236 = vld [vmem:[%s0 + $0x98] sm:$0xff]
  %v237 = vld [vmem:[%s0 + $0xa0] sm:$0xff]
  %v238 = vld [vmem:[%s0 + $0xa8] sm:$0xff]
  %v239 = vld [vmem:[%s0 + $0xb0] sm:$0xff]
  %v240 = vld [vmem:[%s0 + $0xb8] sm:$0xff]
  %v241 = vld [vmem:[%s0 + $0xc0] sm:$0xff]
  %v242 = vld [vmem:[%s0 + $0xc8] sm:$0xff]
  %v243 = vld [vmem:[%s0 + $0xd0] sm:$0xff]
  %v244 = vld [vmem:[%s0 + $0xd8] sm:$0xff]
  %v245 = vld [vmem:[%s0 + $0xe0] sm:$0xff]
  %v246 = vld [vmem:[%s0 + $0xe8] sm:$0xff]
  %v247 = vld [vmem:[%s0 + $0xf0] sm:$0xff]
  %v248 = vld [vmem:[%s0 + $0xf8] sm:$0xff]
  %v249 = vand.u32 %v217, 31
  %v250 = vand.u32 %v218, 31
  %v251 = vand.u32 %v219, 31
  %v252 = vand.u32 %v220, 31
  %v253 = vand.u32 %v221, 31
  %v254 = vand.u32 %v222, 31
  %v255 = vand.u32 %v223, 31
  %v256 = vand.u32 %v224, 31
  %v257 = vand.u32 %v225, 31
  %v258 = vand.u32 %v226, 31
  %v259 = vand.u32 %v227, 31
  %v260 = vand.u32 %v228, 31
  %v261 = vand.u32 %v229, 31
  %v262 = vand.u32 %v230, 31
  %v263 = vand.u32 %v231, 31
  %v264 = vand.u32 %v232, 31
  %v265 = vand.u32 %v233, 31
  %v266 = vand.u32 %v234, 31
  %v267 = vand.u32 %v235, 31
  %v268 = vand.u32 %v236, 31
  %v269 = vand.u32 %v237, 31
  %v270 = vand.u32 %v238, 31
  %v271 = vand.u32 %v239, 31
  %v272 = vand.u32 %v240, 31
  %v273 = vand.u32 %v241, 31
  %v274 = vand.u32 %v242, 31
  %v275 = vand.u32 %v243, 31
  %v276 = vand.u32 %v244, 31
  %v277 = vand.u32 %v245, 31
  %v278 = vand.u32 %v246, 31
  %v279 = vand.u32 %v247, 31
  %v280 = vand.u32 %v248, 31
  %v281 = vlaneseq
  %v282 = vand.u32 %v281, 127
  %283 = vset.pattern.permute.xlu0 0
  %284 = vperm.xlu0 %283, %v249
  %v285 = vpop.permute.xlu0 %284
  %286 = vset.pattern.permute.xlu0 0
  %287 = vperm.xlu0 %286, %v250
  %v288 = vpop.permute.xlu0 %287
  %289 = vset.pattern.permute.xlu0 0
  %290 = vperm.xlu0 %289, %v251
  %v291 = vpop.permute.xlu0 %290
  %292 = vset.pattern.permute.xlu0 0
  %293 = vperm.xlu0 %292, %v252
  %v294 = vpop.permute.xlu0 %293
  %295 = vset.pattern.permute.xlu0 0
  %296 = vperm.xlu0 %295, %v253
  %v297 = vpop.permute.xlu0 %296
  %298 = vset.pattern.permute.xlu0 0
  %299 = vperm.xlu0 %298, %v254
  %v300 = vpop.permute.xlu0 %299
  %301 = vset.pattern.permute.xlu0 0
  %302 = vperm.xlu0 %301, %v255
  %v303 = vpop.permute.xlu0 %302
  %304 = vset.pattern.permute.xlu0 0
  %305 = vperm.xlu0 %304, %v256
  %v306 = vpop.permute.xlu0 %305
  %307 = vset.pattern.permute.xlu0 0
  %308 = vperm.xlu0 %307, %v257
  %v309 = vpop.permute.xlu0 %308
  %310 = vset.pattern.permute.xlu0 0
  %311 = vperm.xlu0 %310, %v258
  %v312 = vpop.permute.xlu0 %311
  %313 = vset.pattern.permute.xlu0 0
  %314 = vperm.xlu0 %313, %v259
  %v315 = vpop.permute.xlu0 %314
  %316 = vset.pattern.permute.xlu0 0
  %317 = vperm.xlu0 %316, %v260
  %v318 = vpop.permute.xlu0 %317
  %319 = vset.pattern.permute.xlu0 0
  %320 = vperm.xlu0 %319, %v261
  %v321 = vpop.permute.xlu0 %320
  %322 = vset.pattern.permute.xlu0 0
  %323 = vperm.xlu0 %322, %v262
  %v324 = vpop.permute.xlu0 %323
  %325 = vset.pattern.permute.xlu0 0
  %326 = vperm.xlu0 %325, %v263
  %v327 = vpop.permute.xlu0 %326
  %328 = vset.pattern.permute.xlu0 0
  %329 = vperm.xlu0 %328, %v264
  %v330 = vpop.permute.xlu0 %329
  %331 = vset.pattern.permute.xlu0 0
  %332 = vperm.xlu0 %331, %v265
  %v333 = vpop.permute.xlu0 %332
  %334 = vset.pattern.permute.xlu0 0
  %335 = vperm.xlu0 %334, %v266
  %v336 = vpop.permute.xlu0 %335
  %337 = vset.pattern.permute.xlu0 0
  %338 = vperm.xlu0 %337, %v267
  %v339 = vpop.permute.xlu0 %338
  %340 = vset.pattern.permute.xlu0 0
  %341 = vperm.xlu0 %340, %v268
  %v342 = vpop.permute.xlu0 %341
  %343 = vset.pattern.permute.xlu0 0
  %344 = vperm.xlu0 %343, %v269
  %v345 = vpop.permute.xlu0 %344
  %346 = vset.pattern.permute.xlu0 0
  %347 = vperm.xlu0 %346, %v270
  %v348 = vpop.permute.xlu0 %347
  %349 = vset.pattern.permute.xlu0 0
  %350 = vperm.xlu0 %349, %v271
  %v351 = vpop.permute.xlu0 %350
  %352 = vset.pattern.permute.xlu0 0
  %353 = vperm.xlu0 %352, %v272
  %v354 = vpop.permute.xlu0 %353
  %355 = vset.pattern.permute.xlu0 0
  %356 = vperm.xlu0 %355, %v273
  %v357 = vpop.permute.xlu0 %356
  %358 = vset.pattern.permute.xlu0 0
  %359 = vperm.xlu0 %358, %v274
  %v360 = vpop.permute.xlu0 %359
  %361 = vset.pattern.permute.xlu0 0
  %362 = vperm.xlu0 %361, %v275
  %v363 = vpop.permute.xlu0 %362
  %364 = vset.pattern.permute.xlu0 0
  %365 = vperm.xlu0 %364, %v276
  %v366 = vpop.permute.xlu0 %365
  %367 = vset.pattern.permute.xlu0 0
  %368 = vperm.xlu0 %367, %v277
  %v369 = vpop.permute.xlu0 %368
  %370 = vset.pattern.permute.xlu0 0
  %371 = vperm.xlu0 %370, %v278
  %v372 = vpop.permute.xlu0 %371
  %373 = vset.pattern.permute.xlu0 0
  %374 = vperm.xlu0 %373, %v279
  %v375 = vpop.permute.xlu0 %374
  %376 = vset.pattern.permute.xlu0 0
  %377 = vperm.xlu0 %376, %v280
  %v378 = vpop.permute.xlu0 %377
  %vm379 = vcmp.eq.s32.totalorder %v282, %v285
  %vm380 = vcmp.eq.s32.totalorder %v282, %v288
  %vm381 = vcmp.eq.s32.totalorder %v282, %v291
  %vm382 = vcmp.eq.s32.totalorder %v282, %v294
  %vm383 = vcmp.eq.s32.totalorder %v282, %v297
  %vm384 = vcmp.eq.s32.totalorder %v282, %v300
  %vm385 = vcmp.eq.s32.totalorder %v282, %v303
  %vm386 = vcmp.eq.s32.totalorder %v282, %v306
  %vm387 = vcmp.eq.s32.totalorder %v282, %v309
  %vm388 = vcmp.eq.s32.totalorder %v282, %v312
  %vm389 = vcmp.eq.s32.totalorder %v282, %v315
  %vm390 = vcmp.eq.s32.totalorder %v282, %v318
  %vm391 = vcmp.eq.s32.totalorder %v282, %v321
  %vm392 = vcmp.eq.s32.totalorder %v282, %v324
  %vm393 = vcmp.eq.s32.totalorder %v282, %v327
  %vm394 = vcmp.eq.s32.totalorder %v282, %v330
  %vm395 = vcmp.eq.s32.totalorder %v282, %v333
  %vm396 = vcmp.eq.s32.totalorder %v282, %v336
  %vm397 = vcmp.eq.s32.totalorder %v282, %v339
  %vm398 = vcmp.eq.s32.totalorder %v282, %v342
  %vm399 = vcmp.eq.s32.totalorder %v282, %v345
  %vm400 = vcmp.eq.s32.totalorder %v282, %v348
  %vm401 = vcmp.eq.s32.totalorder %v282, %v351
  %vm402 = vcmp.eq.s32.totalorder %v282, %v354
  %vm403 = vcmp.eq.s32.totalorder %v282, %v357
  %vm404 = vcmp.eq.s32.totalorder %v282, %v360
  %vm405 = vcmp.eq.s32.totalorder %v282, %v363
  %vm406 = vcmp.eq.s32.totalorder %v282, %v366
  %vm407 = vcmp.eq.s32.totalorder %v282, %v369
  %vm408 = vcmp.eq.s32.totalorder %v282, %v372
  %vm409 = vcmp.eq.s32.totalorder %v282, %v375
  %vm410 = vcmp.eq.s32.totalorder %v282, %v378
  %412 = vset.pattern.permute.xlu0 0
  %413 = vperm.xlu0 %412, %v185
  %v414 = vpop.permute.xlu0 %413
  %417 = vset.pattern.permute.xlu0 0
  %418 = vperm.xlu0 %417, %v186
  %v419 = vpop.permute.xlu0 %418
  %422 = vset.pattern.permute.xlu0 0
  %423 = vperm.xlu0 %422, %v187
  %v424 = vpop.permute.xlu0 %423
  %427 = vset.pattern.permute.xlu0 0
  %428 = vperm.xlu0 %427, %v188
  %v429 = vpop.permute.xlu0 %428
  %432 = vset.pattern.permute.xlu0 0
  %433 = vperm.xlu0 %432, %v189
  %v434 = vpop.permute.xlu0 %433
  %437 = vset.pattern.permute.xlu0 0
  %438 = vperm.xlu0 %437, %v190
  %v439 = vpop.permute.xlu0 %438
  %442 = vset.pattern.permute.xlu0 0
  %443 = vperm.xlu0 %442, %v191
  %v444 = vpop.permute.xlu0 %443
  %447 = vset.pattern.permute.xlu0 0
  %448 = vperm.xlu0 %447, %v192
  %v449 = vpop.permute.xlu0 %448
  %452 = vset.pattern.permute.xlu0 0
  %453 = vperm.xlu0 %452, %v193
  %v454 = vpop.permute.xlu0 %453
  %457 = vset.pattern.permute.xlu0 0
  %458 = vperm.xlu0 %457, %v194
  %v459 = vpop.permute.xlu0 %458
  %462 = vset.pattern.permute.xlu0 0
  %463 = vperm.xlu0 %462, %v195
  %v464 = vpop.permute.xlu0 %463
  %467 = vset.pattern.permute.xlu0 0
  %468 = vperm.xlu0 %467, %v196
  %v469 = vpop.permute.xlu0 %468
  %472 = vset.pattern.permute.xlu0 0
  %473 = vperm.xlu0 %472, %v197
  %v474 = vpop.permute.xlu0 %473
  %477 = vset.pattern.permute.xlu0 0
  %478 = vperm.xlu0 %477, %v198
  %v479 = vpop.permute.xlu0 %478
  %482 = vset.pattern.permute.xlu0 0
  %483 = vperm.xlu0 %482, %v199
  %v484 = vpop.permute.xlu0 %483
  %487 = vset.pattern.permute.xlu0 0
  %488 = vperm.xlu0 %487, %v200
  %v489 = vpop.permute.xlu0 %488
  %492 = vset.pattern.permute.xlu0 0
  %493 = vperm.xlu0 %492, %v201
  %v494 = vpop.permute.xlu0 %493
  %497 = vset.pattern.permute.xlu0 0
  %498 = vperm.xlu0 %497, %v202
  %v499 = vpop.permute.xlu0 %498
  %502 = vset.pattern.permute.xlu0 0
  %503 = vperm.xlu0 %502, %v203
  %v504 = vpop.permute.xlu0 %503
  %507 = vset.pattern.permute.xlu0 0
  %508 = vperm.xlu0 %507, %v204
  %v509 = vpop.permute.xlu0 %508
  %512 = vset.pattern.permute.xlu0 0
  %513 = vperm.xlu0 %512, %v205
  %v514 = vpop.permute.xlu0 %513
  %517 = vset.pattern.permute.xlu0 0
  %518 = vperm.xlu0 %517, %v206
  %v519 = vpop.permute.xlu0 %518
  %522 = vset.pattern.permute.xlu0 0
  %523 = vperm.xlu0 %522, %v207
  %v524 = vpop.permute.xlu0 %523
  %527 = vset.pattern.permute.xlu0 0
  %528 = vperm.xlu0 %527, %v208
  %v529 = vpop.permute.xlu0 %528
  %532 = vset.pattern.permute.xlu0 0
  %533 = vperm.xlu0 %532, %v209
  %v534 = vpop.permute.xlu0 %533
  %537 = vset.pattern.permute.xlu0 0
  %538 = vperm.xlu0 %537, %v210
  %v539 = vpop.permute.xlu0 %538
  %542 = vset.pattern.permute.xlu0 0
  %543 = vperm.xlu0 %542, %v211
  %v544 = vpop.permute.xlu0 %543
  %547 = vset.pattern.permute.xlu0 0
  %548 = vperm.xlu0 %547, %v212
  %v549 = vpop.permute.xlu0 %548
  %552 = vset.pattern.permute.xlu0 0
  %553 = vperm.xlu0 %552, %v213
  %v554 = vpop.permute.xlu0 %553
  %557 = vset.pattern.permute.xlu0 0
  %558 = vperm.xlu0 %557, %v214
  %v559 = vpop.permute.xlu0 %558
  %562 = vset.pattern.permute.xlu0 0
  %563 = vperm.xlu0 %562, %v215
  %v564 = vpop.permute.xlu0 %563
  %567 = vset.pattern.permute.xlu0 0
  %568 = vperm.xlu0 %567, %v216
  %v569 = vpop.permute.xlu0 %568
  %v571 = vsel %vm379, %v414, 0.0
  %v572 = vsel %vm380, %v419, 0.0
  %v573 = vsel %vm381, %v424, 0.0
  %v574 = vsel %vm382, %v429, 0.0
  %v575 = vsel %vm383, %v434, 0.0
  %v576 = vsel %vm384, %v439, 0.0
  %v577 = vsel %vm385, %v444, 0.0
  %v578 = vsel %vm386, %v449, 0.0
  %v579 = vsel %vm387, %v454, 0.0
  %v580 = vsel %vm388, %v459, 0.0
  %v581 = vsel %vm389, %v464, 0.0
  %v582 = vsel %vm390, %v469, 0.0
  %v583 = vsel %vm391, %v474, 0.0
  %v584 = vsel %vm392, %v479, 0.0
  %v585 = vsel %vm393, %v484, 0.0
  %v586 = vsel %vm394, %v489, 0.0
  %v587 = vsel %vm395, %v494, 0.0
  %v588 = vsel %vm396, %v499, 0.0
  %v589 = vsel %vm397, %v504, 0.0
  %v590 = vsel %vm398, %v509, 0.0
  %v591 = vsel %vm399, %v514, 0.0
  %v592 = vsel %vm400, %v519, 0.0
  %v593 = vsel %vm401, %v524, 0.0
  %v594 = vsel %vm402, %v529, 0.0
  %v595 = vsel %vm403, %v534, 0.0
  %v596 = vsel %vm404, %v539, 0.0
  %v597 = vsel %vm405, %v544, 0.0
  %v598 = vsel %vm406, %v549, 0.0
  %v599 = vsel %vm407, %v554, 0.0
  %v600 = vsel %vm408, %v559, 0.0
  %v601 = vsel %vm409, %v564, 0.0
  %v602 = vsel %vm410, %v569, 0.0
  %v603 = vpack.c.bf16 %v572, %v571
  %v604 = vpack.c.bf16 %v574, %v573
  %v605 = vpack.c.bf16 %v576, %v575
  %v606 = vpack.c.bf16 %v578, %v577
  %v607 = vpack.c.bf16 %v580, %v579
  %v608 = vpack.c.bf16 %v582, %v581
  %v609 = vpack.c.bf16 %v584, %v583
  %v610 = vpack.c.bf16 %v586, %v585
  %v611 = vpack.c.bf16 %v588, %v587
  %v612 = vpack.c.bf16 %v590, %v589
  %v613 = vpack.c.bf16 %v592, %v591
  %v614 = vpack.c.bf16 %v594, %v593
  %v615 = vpack.c.bf16 %v596, %v595
  %v616 = vpack.c.bf16 %v598, %v597
  %v617 = vpack.c.bf16 %v600, %v599
  %v618 = vpack.c.bf16 %v602, %v601
  %v619 = vld [vmem:[%s4] sm:$0xff]
  %v620 = vld [vmem:[%s4 + $0x8] sm:$0xff]
  %v621 = vld [vmem:[%s4 + $0x10] sm:$0xff]
  %v622 = vld [vmem:[%s4 + $0x18] sm:$0xff]
  %v623 = vpack.c.bf16 %v620, %v619
  %v624 = vpack.c.bf16 %v622, %v621
  %vm625 = vcmask 261120
  %v627 = vsel %vm625, %v603, 0
  %v630 = vsel %vm625, %v604, 0
  %v633 = vsel %vm625, %v605, 0
  %v636 = vsel %vm625, %v606, 0
  %v639 = vsel %vm625, %v607, 0
  %v642 = vsel %vm625, %v608, 0
  %v645 = vsel %vm625, %v609, 0
  %v648 = vsel %vm625, %v610, 0
  %v651 = vsel %vm625, %v611, 0
  %v654 = vsel %vm625, %v612, 0
  %v657 = vsel %vm625, %v613, 0
  %v660 = vsel %vm625, %v614, 0
  %v663 = vsel %vm625, %v615, 0
  %v666 = vsel %vm625, %v616, 0
  %v669 = vsel %vm625, %v617, 0
  %v672 = vsel %vm625, %v618, 0
  %674 = vmatprep.subr.bf16.mxu0 0
  %675 = vmatpush1.bf16.msra.mxu0 %v623
  %676 = vmatprep.subr.bf16.mxu0 0
  %677 = vmatpush1.bf16.msra.mxu0 %v624
  %678 = vmatprep.subr.bf16.mxu0 0
  %679 = vmatpush1.bf16.msra.mxu0 0
  %680 = vmatprep.subr.bf16.mxu0 0
  %681 = vmatpush1.bf16.msra.mxu0 0
  %682 = vmatprep.subr.bf16.mxu0 0
  %683 = vmatpush1.bf16.msra.mxu0 0
  %684 = vmatprep.subr.bf16.mxu0 0
  %685 = vmatpush1.bf16.msra.mxu0 0
  %686 = vmatprep.subr.bf16.mxu0 0
  %687 = vmatpush1.bf16.msra.mxu0 0
  %688 = vmatprep.subr.bf16.mxu0 0
  %689 = vmatpush1.bf16.msra.mxu0 0
  %690 = vmatprep.subr.bf16.mxu0 0
  %691 = vmatpush1.bf16.msra.mxu0 0
  %692 = vmatprep.subr.bf16.mxu0 0
  %693 = vmatpush1.bf16.msra.mxu0 0
  %694 = vmatprep.subr.bf16.mxu0 0
  %695 = vmatpush1.bf16.msra.mxu0 0
  %696 = vmatprep.subr.bf16.mxu0 0
  %697 = vmatpush1.bf16.msra.mxu0 0
  %698 = vmatprep.subr.bf16.mxu0 0
  %699 = vmatpush1.bf16.msra.mxu0 0
  %700 = vmatprep.subr.bf16.mxu0 0
  %701 = vmatpush1.bf16.msra.mxu0 0
  %702 = vmatprep.subr.bf16.mxu0 0
  %703 = vmatpush1.bf16.msra.mxu0 0
  %704 = vmatprep.subr.bf16.mxu0 0
  %705 = vmatpush1.bf16.msra.mxu0 0
  %706 = vmatprep.mubr.bf16.mxu0 0
  %707 = vmatmul.mubr.bf16.gmra.mrb[0].mxu0 %v627
  %v708 = vpop.f32.mrb[0].mxu0
  %v709 = vadd.f32 0.0, %v708
  %v710 = vpop.f32.mrb[0].mxu0
  %v711 = vpop.f32.mrb[0].mxu0
  %v712 = vadd.f32 0.0, %v711
  %v713 = vpop.f32.mrb[0].mxu0
  %714 = vmatprep.mubr.bf16.mxu0 0
  %715 = vmatmul.mubr.bf16.gmra.mrb[0].mxu0 %v630
  %v716 = vpop.f32.mrb[0].mxu0
  %v717 = vadd.f32 0.0, %v716
  %v718 = vpop.f32.mrb[0].mxu0
  %v719 = vpop.f32.mrb[0].mxu0
  %v720 = vadd.f32 0.0, %v719
  %v721 = vpop.f32.mrb[0].mxu0
  %722 = vmatprep.mubr.bf16.mxu0 0
  %723 = vmatmul.mubr.bf16.gmra.mrb[0].mxu0 %v633
  %v724 = vpop.f32.mrb[0].mxu0
  %v725 = vadd.f32 0.0, %v724
  %v726 = vpop.f32.mrb[0].mxu0
  %v727 = vpop.f32.mrb[0].mxu0
  %v728 = vadd.f32 0.0, %v727
  %v729 = vpop.f32.mrb[0].mxu0
  %730 = vmatprep.mubr.bf16.mxu0 0
  %731 = vmatmul.mubr.bf16.gmra.mrb[0].mxu0 %v636
  %v732 = vpop.f32.mrb[0].mxu0
  %v733 = vadd.f32 0.0, %v732
  %v734 = vpop.f32.mrb[0].mxu0
  %v735 = vpop.f32.mrb[0].mxu0
  %v736 = vadd.f32 0.0, %v735
  %v737 = vpop.f32.mrb[0].mxu0
  %738 = vmatprep.mubr.bf16.mxu0 0
  %739 = vmatmul.mubr.bf16.gmra.mrb[0].mxu0 %v639
  %v740 = vpop.f32.mrb[0].mxu0
  %v741 = vadd.f32 0.0, %v740
  %v742 = vpop.f32.mrb[0].mxu0
  %v743 = vpop.f32.mrb[0].mxu0
  %v744 = vadd.f32 0.0, %v743
  %v745 = vpop.f32.mrb[0].mxu0
  %746 = vmatprep.mubr.bf16.mxu0 0
  %747 = vmatmul.mubr.bf16.gmra.mrb[0].mxu0 %v642
  %v748 = vpop.f32.mrb[0].mxu0
  %v749 = vadd.f32 0.0, %v748
  %v750 = vpop.f32.mrb[0].mxu0
  %v751 = vpop.f32.mrb[0].mxu0
  %v752 = vadd.f32 0.0, %v751
  %v753 = vpop.f32.mrb[0].mxu0
  %754 = vmatprep.mubr.bf16.mxu0 0
  %755 = vmatmul.mubr.bf16.gmra.mrb[0].mxu0 %v645
  %v756 = vpop.f32.mrb[0].mxu0
  %v757 = vadd.f32 0.0, %v756
  %v758 = vpop.f32.mrb[0].mxu0
  %v759 = vpop.f32.mrb[0].mxu0
  %v760 = vadd.f32 0.0, %v759
  %v761 = vpop.f32.mrb[0].mxu0
  %762 = vmatprep.mubr.bf16.mxu0 0
  %763 = vmatmul.mubr.bf16.gmra.mrb[0].mxu0 %v648
  %v764 = vpop.f32.mrb[0].mxu0
  %v765 = vadd.f32 0.0, %v764
  %v766 = vpop.f32.mrb[0].mxu0
  %v767 = vpop.f32.mrb[0].mxu0
  %v768 = vadd.f32 0.0, %v767
  %v769 = vpop.f32.mrb[0].mxu0
  %770 = vmatprep.mubr.bf16.mxu0 0
  %771 = vmatmul.mubr.bf16.gmra.mrb[0].mxu0 %v651
  %v772 = vpop.f32.mrb[0].mxu0
  %v773 = vadd.f32 0.0, %v772
  %v774 = vpop.f32.mrb[0].mxu0
  %v775 = vpop.f32.mrb[0].mxu0
  %v776 = vadd.f32 0.0, %v775
  %v777 = vpop.f32.mrb[0].mxu0
  %778 = vmatprep.mubr.bf16.mxu0 0
  %779 = vmatmul.mubr.bf16.gmra.mrb[0].mxu0 %v654
  %v780 = vpop.f32.mrb[0].mxu0
  %v781 = vadd.f32 0.0, %v780
  %v782 = vpop.f32.mrb[0].mxu0
  %v783 = vpop.f32.mrb[0].mxu0
  %v784 = vadd.f32 0.0, %v783
  %v785 = vpop.f32.mrb[0].mxu0
  %786 = vmatprep.mubr.bf16.mxu0 0
  %787 = vmatmul.mubr.bf16.gmra.mrb[0].mxu0 %v657
  %v788 = vpop.f32.mrb[0].mxu0
  %v789 = vadd.f32 0.0, %v788
  %v790 = vpop.f32.mrb[0].mxu0
  %v791 = vpop.f32.mrb[0].mxu0
  %v792 = vadd.f32 0.0, %v791
  %v793 = vpop.f32.mrb[0].mxu0
  %794 = vmatprep.mubr.bf16.mxu0 0
  %795 = vmatmul.mubr.bf16.gmra.mrb[0].mxu0 %v660
  %v796 = vpop.f32.mrb[0].mxu0
  %v797 = vadd.f32 0.0, %v796
  %v798 = vpop.f32.mrb[0].mxu0
  %v799 = vpop.f32.mrb[0].mxu0
  %v800 = vadd.f32 0.0, %v799
  %v801 = vpop.f32.mrb[0].mxu0
  %802 = vmatprep.mubr.bf16.mxu0 0
  %803 = vmatmul.mubr.bf16.gmra.mrb[0].mxu0 %v663
  %v804 = vpop.f32.mrb[0].mxu0
  %v805 = vadd.f32 0.0, %v804
  %v806 = vpop.f32.mrb[0].mxu0
  %v807 = vpop.f32.mrb[0].mxu0
  %v808 = vadd.f32 0.0, %v807
  %v809 = vpop.f32.mrb[0].mxu0
  %810 = vmatprep.mubr.bf16.mxu0 0
  %811 = vmatmul.mubr.bf16.gmra.mrb[0].mxu0 %v666
  %v812 = vpop.f32.mrb[0].mxu0
  %v813 = vadd.f32 0.0, %v812
  %v814 = vpop.f32.mrb[0].mxu0
  %v815 = vpop.f32.mrb[0].mxu0
  %v816 = vadd.f32 0.0, %v815
  %v817 = vpop.f32.mrb[0].mxu0
  %818 = vmatprep.mubr.bf16.mxu0 0
  %819 = vmatmul.mubr.bf16.gmra.mrb[0].mxu0 %v669
  %v820 = vpop.f32.mrb[0].mxu0
  %v821 = vadd.f32 0.0, %v820
  %v822 = vpop.f32.mrb[0].mxu0
  %v823 = vpop.f32.mrb[0].mxu0
  %v824 = vadd.f32 0.0, %v823
  %v825 = vpop.f32.mrb[0].mxu0
  %826 = vmatprep.mubr.bf16.mxu0 0
  %827 = vmatmul.mubr.bf16.gmra.mrb[0].mxu0 %v672
  %v828 = vpop.f32.mrb[0].mxu0
  %v829 = vadd.f32 0.0, %v828
  %v830 = vpop.f32.mrb[0].mxu0
  %v831 = vpop.f32.mrb[0].mxu0
  %v832 = vadd.f32 0.0, %v831
  %v833 = vpop.f32.mrb[0].mxu0
  %834 = vdwg.mxu0
  %v835 = vld [vmem:[%s3] sm:$0xff]
  %v836 = vld [vmem:[%s3 + $0x8] sm:$0xff]
  %v837 = vld [vmem:[%s3 + $0x10] sm:$0xff]
  %v838 = vld [vmem:[%s3 + $0x18] sm:$0xff]
  %839 = vmatprep.subr.mxu0 0.0
  %840 = vmatpush1.msra.mxu0 %v709
  %841 = vmatprep.subr.mxu0 0.0
  %842 = vmatpush1.msra.mxu0 %v712
  %843 = vmatprep.subr.mxu0 0.0
  %844 = vmatpush1.msra.mxu0 %v717
  %845 = vmatprep.subr.mxu0 0.0
  %846 = vmatpush1.msra.mxu0 %v720
  %847 = vmatprep.subr.mxu0 0.0
  %848 = vmatpush1.msra.mxu0 %v725
  %849 = vmatprep.subr.mxu0 0.0
  %850 = vmatpush1.msra.mxu0 %v728
  %851 = vmatprep.subr.mxu0 0.0
  %852 = vmatpush1.msra.mxu0 %v733
  %853 = vmatprep.subr.mxu0 0.0
  %854 = vmatpush1.msra.mxu0 %v736
  %855 = vmatprep.subr.mxu0 0.0
  %856 = vmatpush1.msra.mxu0 %v741
  %857 = vmatprep.subr.mxu0 0.0
  %858 = vmatpush1.msra.mxu0 %v744
  %859 = vmatprep.subr.mxu0 0.0
  %860 = vmatpush1.msra.mxu0 %v749
  %861 = vmatprep.subr.mxu0 0.0
  %862 = vmatpush1.msra.mxu0 %v752
  %863 = vmatprep.subr.mxu0 0.0
  %864 = vmatpush1.msra.mxu0 %v757
  %865 = vmatprep.subr.mxu0 0.0
  %866 = vmatpush1.msra.mxu0 %v760
  %867 = vmatprep.subr.mxu0 0.0
  %868 = vmatpush1.msra.mxu0 %v765
  %869 = vmatprep.subr.mxu0 0.0
  %870 = vmatpush1.msra.mxu0 %v768
  %871 = vmatprep.subr.mxu0 0.0
  %872 = vmatpush1.msra.mxu0 %v773
  %873 = vmatprep.subr.mxu0 0.0
  %874 = vmatpush1.msra.mxu0 %v776
  %875 = vmatprep.subr.mxu0 0.0
  %876 = vmatpush1.msra.mxu0 %v781
  %877 = vmatprep.subr.mxu0 0.0
  %878 = vmatpush1.msra.mxu0 %v784
  %879 = vmatprep.subr.mxu0 0.0
  %880 = vmatpush1.msra.mxu0 %v789
  %881 = vmatprep.subr.mxu0 0.0
  %882 = vmatpush1.msra.mxu0 %v792
  %883 = vmatprep.subr.mxu0 0.0
  %884 = vmatpush1.msra.mxu0 %v797
  %885 = vmatprep.subr.mxu0 0.0
  %886 = vmatpush1.msra.mxu0 %v800
  %887 = vmatprep.subr.mxu0 0.0
  %888 = vmatpush1.msra.mxu0 %v805
  %889 = vmatprep.subr.mxu0 0.0
  %890 = vmatpush1.msra.mxu0 %v808
  %891 = vmatprep.subr.mxu0 0.0
  %892 = vmatpush1.msra.mxu0 %v813
  %893 = vmatprep.subr.mxu0 0.0
  %894 = vmatpush1.msra.mxu0 %v816
  %895 = vmatprep.subr.mxu0 0.0
  %896 = vmatpush1.msra.mxu0 %v821
  %897 = vmatprep.subr.mxu0 0.0
  %898 = vmatpush1.msra.mxu0 %v824
  %899 = vmatprep.subr.mxu0 0.0
  %900 = vmatpush1.msra.mxu0 %v829
  %901 = vmatprep.subr.mxu0 0.0
  %902 = vmatpush1.msra.mxu0 %v832
  %903 = vmatprep.mubr.f32.mxu0 %v836
  %904 = vmatmul.mubr.f32.gmra.mrb[0].mxu0 %v835
  %v905 = vpop.f32.mrb[0].mxu0
  %v906 = vadd.f32 0.0, %v905
  %v907 = vpop.f32.mrb[0].mxu0
  %908 = vmatprep.mubr.f32.mxu0 %v838
  %909 = vmatmul.mubr.f32.gmra.mrb[0].mxu0 %v837
  %v910 = vpop.f32.mrb[0].mxu0
  %v911 = vadd.f32 0.0, %v910
  %v912 = vpop.f32.mrb[0].mxu0
  %913 = vdwg.mxu0
  %v914 = vld [vmem:[%s2] sm:$0xff]
  %v915 = vld [vmem:[%s2 + $0x8] sm:$0xff]
  %v916 = vmax.f32 %v914, 1.0
  %v917 = vmax.f32 %v915, 1.0
  %v918 = vrcp.pop %v916
  %v919 = vrcp.pop %v917
  %921 = vset.pattern.permute.xlu0 0
  %922 = vperm.xlu0 %921, %v918
  %v923 = vpop.permute.xlu0 %922
  %926 = vset.pattern.permute.xlu0 0
  %927 = vperm.xlu0 %926, %v919
  %v928 = vpop.permute.xlu0 %927
  %v930 = vmul.f32 %v906, %v923
  %v931 = vmul.f32 %v911, %v928
  %v932 = vld [vmem:[%s5] sm:$0xff]
  %v933 = vld [vmem:[%s5 + $0x8] sm:$0xff]
  %v934 = vld [vmem:[%s5 + $0x10] sm:$0xff]
  %v935 = vld [vmem:[%s5 + $0x18] sm:$0xff]
  %v937 = vsel %vm625, %v930, 0
  %v940 = vsel %vm625, %v931, 0
  %942 = vmatprep.subr.mxu0 0.0
  %943 = vmatpush1.msra.mxu0 %v932
  %944 = vmatprep.subr.mxu0 0.0
  %945 = vmatpush1.msra.mxu0 %v933
  %946 = vmatprep.subr.mxu0 0.0
  %947 = vmatpush1.msra.mxu0 %v934
  %948 = vmatprep.subr.mxu0 0.0
  %949 = vmatpush1.msra.mxu0 %v935
  %950 = vmatprep.subr.mxu0 0.0
  %951 = vmatpush1.msra.mxu0 0.0
  %952 = vmatprep.subr.mxu0 0.0
  %953 = vmatpush1.msra.mxu0 0.0
  %954 = vmatprep.subr.mxu0 0.0
  %955 = vmatpush1.msra.mxu0 0.0
  %956 = vmatprep.subr.mxu0 0.0
  %957 = vmatpush1.msra.mxu0 0.0
  %958 = vmatprep.subr.mxu0 0.0
  %959 = vmatpush1.msra.mxu0 0.0
  %960 = vmatprep.subr.mxu0 0.0
  %961 = vmatpush1.msra.mxu0 0.0
  %962 = vmatprep.subr.mxu0 0.0
  %963 = vmatpush1.msra.mxu0 0.0
  %964 = vmatprep.subr.mxu0 0.0
  %965 = vmatpush1.msra.mxu0 0.0
  %966 = vmatprep.subr.mxu0 0.0
  %967 = vmatpush1.msra.mxu0 0.0
  %968 = vmatprep.subr.mxu0 0.0
  %969 = vmatpush1.msra.mxu0 0.0
  %970 = vmatprep.subr.mxu0 0.0
  %971 = vmatpush1.msra.mxu0 0.0
  %972 = vmatprep.subr.mxu0 0.0
  %973 = vmatpush1.msra.mxu0 0.0
  %974 = vmatprep.subr.mxu0 0.0
  %975 = vmatpush1.msra.mxu0 0.0
  %976 = vmatprep.subr.mxu0 0.0
  %977 = vmatpush1.msra.mxu0 0.0
  %978 = vmatprep.subr.mxu0 0.0
  %979 = vmatpush1.msra.mxu0 0.0
  %980 = vmatprep.subr.mxu0 0.0
  %981 = vmatpush1.msra.mxu0 0.0
  %982 = vmatprep.subr.mxu0 0.0
  %983 = vmatpush1.msra.mxu0 0.0
  %984 = vmatprep.subr.mxu0 0.0
  %985 = vmatpush1.msra.mxu0 0.0
  %986 = vmatprep.subr.mxu0 0.0
  %987 = vmatpush1.msra.mxu0 0.0
  %988 = vmatprep.subr.mxu0 0.0
  %989 = vmatpush1.msra.mxu0 0.0
  %990 = vmatprep.subr.mxu0 0.0
  %991 = vmatpush1.msra.mxu0 0.0
  %992 = vmatprep.subr.mxu0 0.0
  %993 = vmatpush1.msra.mxu0 0.0
  %994 = vmatprep.subr.mxu0 0.0
  %995 = vmatpush1.msra.mxu0 0.0
  %996 = vmatprep.subr.mxu0 0.0
  %997 = vmatpush1.msra.mxu0 0.0
  %998 = vmatprep.subr.mxu0 0.0
  %999 = vmatpush1.msra.mxu0 0.0
  %1000 = vmatprep.subr.mxu0 0.0
  %1001 = vmatpush1.msra.mxu0 0.0
  %1002 = vmatprep.subr.mxu0 0.0
  %1003 = vmatpush1.msra.mxu0 0.0
  %1004 = vmatprep.subr.mxu0 0.0
  %1005 = vmatpush1.msra.mxu0 0.0
  %1006 = vmatprep.mubr.f32.mxu0 0.0
  %1007 = vmatmul.mubr.f32.gmra.mrb[0].mxu0 %v937
  %v1008 = vpop.f32.mrb[0].mxu0
  %v1009 = vadd.f32 0.0, %v1008
  %v1010 = vpop.f32.mrb[0].mxu0
  %1011 = vmatprep.mubr.f32.mxu0 0.0
  %1012 = vmatmul.mubr.f32.gmra.mrb[0].mxu0 %v940
  %v1013 = vpop.f32.mrb[0].mxu0
  %v1014 = vadd.f32 0.0, %v1013
  %v1015 = vpop.f32.mrb[0].mxu0
  %1016 = vdwg.mxu0
  %v1017 = vsub.f32 %v1009, %v1014
  %v1018 = vsub.f32 0.0, %v1017
  %v1019 = vmul.f32 %v1018, 1.442695
  %v1020 = vpow.pop %v1019
  %v1021 = vadd.f32 %v1020, 1.0
  %v1022 = vrcp.pop %v1021
  %v1023 = vmax.f32 %v1018, 0.0
  %v1024 = vand.u32 2147483647, %v1017
  %v1025 = vsub.f32 0.0, %v1024
  %v1026 = vmul.f32 %v1025, 1.442695
  %v1027 = vpow.pop %v1026
  %v1028 = vadd.f32 %v1027, 1.0
  %v1029 = vlog2.pop %v1028
  %v1030 = vmul.f32 %v1029, 0.6931472
  %v1031 = vadd.f32 %v1023, %v1030
  %vm1032 = vcmask 7168
  %v1033 = vsel %vm1032, %v1031, 0.0
  %v1034 = vrot.slane %v1033, 4
  %v1035 = vadd.f32 %v1033, %v1034
  %v1036 = vrot.slane %v1035, 2
  %v1037 = vadd.f32 %v1035, %v1036
  %v1038 = vrot.slane %v1037, 1
  %v1039 = vadd.f32 %v1037, %v1038
  %v1040 = vmul.f32 %v1039, 0.125
  %vm1041 = vcmp.eq.s32.totalorder %v282, 0
  %vm1042 = vcmp.eq.s32.totalorder %v282, 1
  %1044 = vset.pattern.permute.xlu0 0
  %1045 = vperm.xlu0 %1044, %v1040
  %v1046 = vpop.permute.xlu0 %1045
  %v1048 = vsel %vm1042, %v1046, 0.0
  %1050 = vset.pattern.permute.xlu0 0
  %1051 = vperm.xlu0 %1050, %v1022
  %v1052 = vpop.permute.xlu0 %1051
  %v1054 = vsel %vm1041, %v1052, %v1048
  %1055 = vst [vmem:[%s6] sm:$0xff] %v1054
  // Predicated region
  $region26: #{scorer_forward.1} parent=0 // pred_check
    _
  $region27: #{scorer_forward.1} parent=0 // pred_check_branch
    %1057 = sbr.rel (0) target = $region29
  $region28: #{scorer_forward.1} parent=0 // pred_region
    _
  $region29: #{scorer_forward.1} parent=0 // pred_fallthru
    _
  // Predicated region
  $region30: #{scorer_forward.1} parent=0 // pred_check
    _
  $region31: #{scorer_forward.1} parent=0 // pred_check_branch
    %1059 = sbr.rel (0) target = $region33
  $region32: #{scorer_forward.1} parent=0 // pred_region
    _
  $region33: #{scorer_forward.1} parent=0 // pred_fallthru
    _

</llo_original>
